<compile_context>
chip_gen: v6e
topology: v6e:2x2x1
jax: 0.10.0
libtpu: 0.0.40
codegen_flags: <defaults>
</compile_context>

<pallas_src>
import math

import jax
import jax.numpy as jnp
from jax.experimental import pallas as pl
from jax.experimental.pallas import tpu as pltpu


# ---------------------------------------------------------------------------
# Pallas kernel
# ---------------------------------------------------------------------------
def _equiv_2to2_sym_kernel(x_ref, wdense_ref, wvec_ref, srow_ref, sdg_ref,
                           sbcast_ref, bias_ref, o_ref):
    """One grid step over TB batch elements (fully batched, no per-elem loop).

    x_ref     : (TB*C, P)             rows ordered (batch, channel), P = padded N*N
    wdense_ref: (TB*C_out, TB*C)      kron(I_TB, w_identity)          (mm dtype)
    wvec_ref  : (5*TB*C_out, 2*TB*C)  kron-block weights mapping [row_sum ; diag]
                                      -> [row-bcast ; col-bcast ; diag ;
                                          sum_all-pre ; sum_diag-pre]  (f32)
    srow_ref  : (P, N)                flat -> row-sum selector         (mm dtype)
    sdg_ref   : (P, N)                flat -> diagonal selector        (mm dtype)
    sbcast_ref: (3N, P)               [row-bcast ; col-bcast ; diag-place] (f32)
    bias_ref  : (2*TB*C_out, 1)       [bias_all ; bias_diag] tiled per element
    o_ref     : (TB*C_out, P)         rows ordered (batch, channel)
    """
    m = o_ref.shape[0]                     # TB * C_out
    x = x_ref[...]                         # native dtype (bf16 stays bf16)

    # --- basis reductions, batched over all (TB, C) rows -------------------
    row_sum = jnp.dot(x, srow_ref[...], preferred_element_type=jnp.float32)   # (TB*C, N)
    diag = jnp.dot(x, sdg_ref[...], preferred_element_type=jnp.float32)       # (TB*C, N)
    rd = jnp.concatenate([row_sum, diag], axis=0)                             # (2*TB*C, N)

    # --- all vector-valued basis terms + scalar pre-terms in ONE matmul ----
    v = jnp.dot(wvec_ref[...], rd, preferred_element_type=jnp.float32)        # (5M, N)
    r_vec = v[0 * m:1 * m]          # added to every column of row i
    c_vec = v[1 * m:2 * m]          # added to every row of column j
    d_vec = v[2 * m:3 * m]          # added on the diagonal
    s_all = v[3 * m:4 * m]          # lane-reduce -> constant everywhere
    s_dia = v[4 * m:5 * m]          # lane-reduce -> constant on the diagonal

    bias = bias_ref[...]                                                      # (2M, 1)
    b_all = jnp.sum(s_all, axis=-1, keepdims=True) + bias[:m]                 # (M, 1)
    b_dia = jnp.sum(s_dia, axis=-1, keepdims=True) + bias[m:]                 # (M, 1)

    # --- dense term + single fused broadcast-back matmul -------------------
    bc_in = jnp.concatenate([r_vec, c_vec, d_vec + b_dia], axis=-1)           # (M, 3N)
    y = jnp.dot(wdense_ref[...], x, preferred_element_type=jnp.float32)       # (M, P)
    y = y + jnp.dot(bc_in, sbcast_ref[...], preferred_element_type=jnp.float32)
    y = y + b_all
    o_ref[...] = y.astype(o_ref.dtype)


# ---------------------------------------------------------------------------
# Wrapper helpers
# ---------------------------------------------------------------------------
def _split_weights(weight, n, normalize):
    """Split the (C_out, 11*C, 1, 1) weight; fold normalization in.

    Returns
      w_dense : (C_out, C)      identity basis op
      w_a     : (5*C_out, C)    weights acting on row_sum, row blocks
                                [row-bcast ; col-bcast ; diag ; sum_all ; sum_diag]
      w_b     : (5*C_out, C)    weights acting on diag, same row-block order
    """
    c_out = weight.shape[0]
    c_in = weight.shape[1] // 11
    w = weight.reshape(c_out, 11, c_in).astype(jnp.float32)
    n1 = (1.0 / n) if normalize else 1.0
    n2 = (1.0 / (n * n)) if normalize else 1.0
    w_dense = w[:, 6, :]
    w_a = jnp.concatenate([w[:, 4, :] * n1, w[:, 5, :] * n1, w[:, 2, :] * n1,
                           w[:, 10, :] * n2, w[:, 3, :] * n2], axis=0)
    w_b = jnp.concatenate([w[:, 7, :], w[:, 8, :], w[:, 0, :],
                           w[:, 9, :] * n1, w[:, 1, :] * n1], axis=0)
    return w_dense, w_a, w_b


def _selectors(n, p, mm_dtype):
    """0/1 selectors in the padded flat layout (built once, resident in VMEM)."""
    flat = jnp.arange(p)
    row_of = flat // n
    col_of = flat % n
    valid = flat < n * n
    idx = jnp.arange(n)
    is_row = (row_of[:, None] == idx[None, :]) & valid[:, None]      # (P, N)
    is_col = (col_of[:, None] == idx[None, :]) & valid[:, None]      # (P, N)
    s_row = is_row.astype(mm_dtype)                                  # row-sum selector
    s_dg = (is_row & is_col).astype(mm_dtype)                        # diag selector
    s_bcast = jnp.concatenate([is_row.T.astype(jnp.float32),         # row broadcast
                               is_col.T.astype(jnp.float32),         # col broadcast
                               (is_row & is_col).T.astype(jnp.float32)],  # diag place
                              axis=0)                                # (3N, P)
    return s_row, s_dg, s_bcast


def _kron_block_diag(w, tb):
    """(R, K) -> (tb*R, tb*K) block-diagonal, rows/cols ordered (t, r)/(t, k)."""
    return jnp.kron(jnp.eye(tb, dtype=w.dtype), w)


def _build_wvec(w_a, w_b, c_out, tb):
    """(5*tb*C_out, 2*tb*C) fused vec/scalar weight acting on [row_sum ; diag]."""
    blocks = []
    for k in range(5):
        a = _kron_block_diag(w_a[k * c_out:(k + 1) * c_out], tb)
        b = _kron_block_diag(w_b[k * c_out:(k + 1) * c_out], tb)
        blocks.append(jnp.concatenate([a, b], axis=1))
    return jnp.concatenate(blocks, axis=0)


def _choose_batch_block(batch, c_in, c_out, p, itemsize, vmem_cap):
    """Largest TB that keeps blocks & kron'd weights bounded, preferring >=2 steps."""
    data_cap = min(16 * 1024 * 1024, vmem_cap // 6)   # double-buffered x+out blocks
    weight_cap = 2 * 1024 * 1024                      # block-diagonal weights
    fitting = []
    for tb in range(1, batch + 1):
        if batch % tb:
            continue
        legal = (tb == batch) or ((tb * c_in) % 8 == 0 and (tb * c_out) % 8 == 0)
        if not legal:
            continue
        data_bytes = 2 * tb * (c_in + c_out) * p * itemsize
        weight_bytes = 4 * (tb * c_out * tb * c_in) + 4 * (5 * tb * c_out * 2 * tb * c_in)
        if data_bytes > data_cap or weight_bytes > weight_cap:
            continue
        fitting.append(tb)
    if not fitting:
        return batch
    multi_step = [tb for tb in fitting if batch // tb >= 2]
    return max(multi_step) if multi_step else max(fitting)


# ---------------------------------------------------------------------------
# Public wrapper
# ---------------------------------------------------------------------------
def linear_equivariant_2to2_symmetric(x, weight, bias_all, bias_diag,
                                      normalize=False, *, batch_block=None):
    """x: (B, C_in, N, N) symmetric, weight: (C_out, 11*C_in, 1, 1),
    bias_all: (C_out,), bias_diag: (C_out, 1)  ->  (B, C_out, N, N)."""
    B, C, N, _ = x.shape
    C_out = weight.shape[0]
    assert weight.shape[1] == 11 * C

    nn = N * N
    P = max(128, ((nn + 127) // 128) * 128)            # lane-dense padded flat dim
    mm_dtype = jnp.bfloat16 if x.dtype == jnp.bfloat16 else jnp.float32
    mm_itemsize = jnp.dtype(mm_dtype).itemsize
    out_itemsize = jnp.dtype(x.dtype).itemsize

    try:
        vmem_cap = int(pltpu.get_tpu_info().vmem_capacity_bytes)
    except Exception:
        vmem_cap = 64 * 1024 * 1024                    # conservative (v7x-safe)

    if batch_block is None:
        batch_block = _choose_batch_block(B, C, C_out, P, mm_itemsize, vmem_cap)
    TB = batch_block
    assert B % TB == 0
    grid = (B // TB,)
    M = TB * C_out

    # --- constants (built once in the wrapper, constant index_map) ----------
    w_dense, w_a, w_b = _split_weights(weight, N, normalize)
    wdense_blk = _kron_block_diag(w_dense, TB).astype(mm_dtype)       # (M, TB*C)
    wvec_blk = _build_wvec(w_a, w_b, C_out, TB)                        # (5M, 2*TB*C)
    bias_cat = jnp.concatenate([
        jnp.tile(jnp.reshape(bias_all, (C_out, 1)).astype(jnp.float32), (TB, 1)),
        jnp.tile(jnp.reshape(bias_diag, (C_out, 1)).astype(jnp.float32), (TB, 1)),
    ], axis=0)                                                          # (2M, 1)
    s_row, s_dg, s_bcast = _selectors(N, P, mm_dtype)

    # --- flattened, lane-dense, mm-dtype input -------------------------------
    xf = x.reshape(B * C, nn).astype(mm_dtype)
    if P != nn:
        xf = jnp.pad(xf, ((0, 0), (0, P - nn)))

    # --- VMEM budget: blocks + constants + f32 intermediates, generation-aware
    const_bytes = (M * TB * C * mm_itemsize + 5 * M * 2 * TB * C * 4
                   + 2 * P * N * mm_itemsize + 3 * N * P * 4 + 2 * M * 128 * 4)
    needed = (2 * TB * C * P * mm_itemsize + 2 * M * P * out_itemsize
              + 2 * const_bytes + 2 * M * P * 4 + 4 * 1024 * 1024)
    vmem_limit = int(min(max(needed, 32 * 1024 * 1024), int(vmem_cap * 0.8)))

    const = lambda b: (0, 0)
    out_flat = pl.pallas_call(
        _equiv_2to2_sym_kernel,
        out_shape=jax.ShapeDtypeStruct((B * C_out, P), x.dtype),
        grid_spec=pltpu.PrefetchScalarGridSpec(
            num_scalar_prefetch=0,
            grid=grid,
            in_specs=[
                pl.BlockSpec((TB * C, P), lambda b: (b, 0)),     # x
                pl.BlockSpec((M, TB * C), const),                # wdense_blk
                pl.BlockSpec((5 * M, 2 * TB * C), const),        # wvec_blk
                pl.BlockSpec((P, N), const),                     # s_row
                pl.BlockSpec((P, N), const),                     # s_dg
                pl.BlockSpec((3 * N, P), const),                 # s_bcast
                pl.BlockSpec((2 * M, 1), const),                 # bias
            ],
            out_specs=pl.BlockSpec((M, P), lambda b: (b, 0)),
        ),
        compiler_params=pltpu.CompilerParams(
            dimension_semantics=("parallel",),
            vmem_limit_bytes=vmem_limit,
        ),
    )(xf, wdense_blk, wvec_blk, s_row, s_dg, s_bcast, bias_cat)

    return out_flat.reshape(B, C_out, P)[..., :nn].reshape(B, C_out, N, N)


# ---------------------------------------------------------------------------
# Pure-JAX reference mirroring the PyTorch forward
# ---------------------------------------------------------------------------
def _equivariant_2_to_2_symmetric_ref(x, normalize):
    N = x.shape[-1]
    eye = jnp.eye(N, dtype=x.dtype)
    diag_part = jnp.diagonal(x, axis1=-2, axis2=-1)               # (B,C,N)
    sum_diag = jnp.sum(diag_part, axis=-1, keepdims=True)         # (B,C,1)
    sum_rows = jnp.sum(x, axis=-1)                                # (B,C,N)
    sum_all = jnp.sum(sum_rows, axis=-1, keepdims=True)           # (B,C,1)

    def diag_embed(v):
        return v[..., :, None] * eye

    d1 = N if normalize else 1
    d2 = N * N if normalize else 1
    return [
        diag_embed(diag_part),                                          # 0
        diag_embed(jnp.broadcast_to(sum_diag, diag_part.shape)) / d1,   # 1
        diag_embed(sum_rows) / d1,                                      # 2
        diag_embed(jnp.broadcast_to(sum_all, diag_part.shape)) / d2,    # 3
        jnp.broadcast_to(sum_rows[..., :, None], x.shape) / d1,         # 4
        jnp.broadcast_to(sum_rows[..., None, :], x.shape) / d1,         # 5
        x,                                                              # 6
        jnp.broadcast_to(diag_part[..., :, None], x.shape),             # 7
        jnp.broadcast_to(diag_part[..., None, :], x.shape),             # 8
        jnp.broadcast_to(sum_diag[..., None], x.shape) / d1,            # 9
        jnp.broadcast_to(sum_all[..., None], x.shape) / d2,             # 10
    ]


def _reference(x, weight, bias_all, bias_diag, normalize=False):
    N = x.shape[-1]
    basis = jnp.concatenate(_equivariant_2_to_2_symmetric_ref(x, normalize),
                            axis=1)                                  # (B,11C,N,N)
    w2d = weight.reshape(weight.shape[0], -1)                        # (C_out,11C)
    out = jnp.sum(w2d[None, :, :, None, None] * basis[:, None, :, :, :], axis=2)
    out = out + bias_all[None, :, None, None]
    out = out + (jnp.reshape(bias_diag, (-1,))[None, :, None, None]
                 * jnp.eye(N, dtype=out.dtype))
    return out


# ---------------------------------------------------------------------------
if __name__ == "__main__":
    B, C_in, C_out, N = 2, 4, 8, 16
    key = jax.random.PRNGKey(0)
    kx, kw, kb1, kb2 = jax.random.split(key, 4)

    xa = jax.random.normal(kx, (B, C_in, N, N), dtype=jnp.float32)
    x = 0.5 * (xa + jnp.swapaxes(xa, -1, -2))          # symmetric input

    # Deterministic init mimicking reset_parameters():
    # kaiming_uniform_(a=sqrt(5)) on (C_out, 11*C_in, 1, 1): fan_in = 11*C_in,
    # bound = 1/sqrt(fan_in); biases uniform(-1/sqrt(11*C_in), 1/sqrt(11*C_in)).
    fan_in = 11 * C_in
    bound = 1.0 / math.sqrt(fan_in)
    weight = jax.random.uniform(kw, (C_out, 11 * C_in, 1, 1), jnp.float32,
                                minval=-bound, maxval=bound)
    bias_all = jax.random.uniform(kb1, (C_out,), jnp.float32,
                                  minval=-bound, maxval=bound)
    bias_diag = jax.random.uniform(kb2, (C_out, 1), jnp.float32,
                                   minval=-bound, maxval=bound)

    out = linear_equivariant_2to2_symmetric(x, weight, bias_all, bias_diag,
                                            normalize=False)
    out = jax.block_until_ready(out)
    ref = _reference(x, weight, bias_all, bias_diag, normalize=False)
    assert out.shape == (B, C_out, N, N), out.shape
    assert jnp.allclose(out, ref, atol=1e-3, rtol=1e-3), \
        float(jnp.max(jnp.abs(out - ref)))

    out_n = linear_equivariant_2to2_symmetric(x, weight, bias_all, bias_diag,
                                              normalize=True)
    out_n = jax.block_until_ready(out_n)
    ref_n = _reference(x, weight, bias_all, bias_diag, normalize=True)
    assert jnp.allclose(out_n, ref_n, atol=1e-3, rtol=1e-3), \
        float(jnp.max(jnp.abs(out_n - ref_n)))

    print("KERNEL_OK")
</pallas_src>

<mosaic_0001>
module attributes {stable_mosaic.version = 11 : i64} {
  func.func @_equiv_2to2_sym_kernel(%arg0: i32, %arg1: memref<8x256xf32, #tpu.memory_space<vmem>>, %arg2: memref<16x8xf32, #tpu.memory_space<vmem>>, %arg3: memref<80x16xf32, #tpu.memory_space<vmem>>, %arg4: memref<256x16xf32, #tpu.memory_space<vmem>>, %arg5: memref<256x16xf32, #tpu.memory_space<vmem>>, %arg6: memref<48x256xf32, #tpu.memory_space<vmem>>, %arg7: memref<32x1xf32, #tpu.memory_space<vmem>>, %arg8: memref<16x256xf32, #tpu.memory_space<vmem>>) attributes {dimension_semantics = [#tpu.dimension_semantics<parallel>], iteration_bounds = array<i64: 1>, scalar_prefetch = 0 : i64, scratch_operands = 0 : i64, tpu.core_type = #tpu.core_type<tc>, window_params = [{transform_indices = @transform_0, window_bounds = array<i64: 8, 256>}, {pipeline_mode = #tpu.pipeline_mode<synchronous>, transform_indices = @transform_1, window_bounds = array<i64: 16, 8>}, {pipeline_mode = #tpu.pipeline_mode<synchronous>, transform_indices = @transform_2, window_bounds = array<i64: 80, 16>}, {pipeline_mode = #tpu.pipeline_mode<synchronous>, transform_indices = @transform_3, window_bounds = array<i64: 256, 16>}, {pipeline_mode = #tpu.pipeline_mode<synchronous>, transform_indices = @transform_4, window_bounds = array<i64: 256, 16>}, {pipeline_mode = #tpu.pipeline_mode<synchronous>, transform_indices = @transform_5, window_bounds = array<i64: 48, 256>}, {pipeline_mode = #tpu.pipeline_mode<synchronous>, transform_indices = @transform_6, window_bounds = array<i64: 32, 1>}, {transform_indices = @transform_7, window_bounds = array<i64: 16, 256>}]} {
    %c0 = arith.constant 0 : index
    %c0_0 = arith.constant 0 : index
    %0 = vector.load %arg1[%c0, %c0_0] : memref<8x256xf32, #tpu.memory_space<vmem>>, vector<8x256xf32>
    %c0_1 = arith.constant 0 : index
    %c0_2 = arith.constant 0 : index
    %1 = vector.load %arg4[%c0_1, %c0_2] : memref<256x16xf32, #tpu.memory_space<vmem>>, vector<256x16xf32>
    %cst = arith.constant dense<0.000000e+00> : vector<8x16xf32>
    %2 = tpu.matmul %0, %1, %cst {dimension_numbers = #tpu.dot_dimension_numbers<[1], [0], [0], [1], [0, 0, 1, 1], [], []>} : vector<8x256xf32>, vector<256x16xf32>, vector<8x16xf32> -> vector<8x16xf32>
    %c0_3 = arith.constant 0 : index
    %c0_4 = arith.constant 0 : index
    %3 = vector.load %arg5[%c0_3, %c0_4] : memref<256x16xf32, #tpu.memory_space<vmem>>, vector<256x16xf32>
    %cst_5 = arith.constant dense<0.000000e+00> : vector<8x16xf32>
    %4 = tpu.matmul %0, %3, %cst_5 {dimension_numbers = #tpu.dot_dimension_numbers<[1], [0], [0], [1], [0, 0, 1, 1], [], []>} : vector<8x256xf32>, vector<256x16xf32>, vector<8x16xf32> -> vector<8x16xf32>
    %5 = tpu.concatenate %2, %4 in 0 : vector<8x16xf32>, vector<8x16xf32> -> vector<16x16xf32>
    %c0_6 = arith.constant 0 : index
    %c0_7 = arith.constant 0 : index
    %6 = vector.load %arg3[%c0_6, %c0_7] : memref<80x16xf32, #tpu.memory_space<vmem>>, vector<80x16xf32>
    %cst_8 = arith.constant dense<0.000000e+00> : vector<80x16xf32>
    %7 = tpu.matmul %6, %5, %cst_8 {dimension_numbers = #tpu.dot_dimension_numbers<[1], [0], [0], [1], [0, 0, 1, 1], [], []>} : vector<80x16xf32>, vector<16x16xf32>, vector<80x16xf32> -> vector<80x16xf32>
    %8 = vector.extract_strided_slice %7 {offsets = [0, 0], sizes = [16, 16], strides = [1, 1]} : vector<80x16xf32> to vector<16x16xf32>
    %9 = vector.extract_strided_slice %7 {offsets = [16, 0], sizes = [16, 16], strides = [1, 1]} : vector<80x16xf32> to vector<16x16xf32>
    %10 = vector.extract_strided_slice %7 {offsets = [32, 0], sizes = [16, 16], strides = [1, 1]} : vector<80x16xf32> to vector<16x16xf32>
    %11 = vector.extract_strided_slice %7 {offsets = [48, 0], sizes = [16, 16], strides = [1, 1]} : vector<80x16xf32> to vector<16x16xf32>
    %12 = vector.extract_strided_slice %7 {offsets = [64, 0], sizes = [16, 16], strides = [1, 1]} : vector<80x16xf32> to vector<16x16xf32>
    %c0_9 = arith.constant 0 : index
    %c0_10 = arith.constant 0 : index
    %13 = vector.load %arg7[%c0_9, %c0_10] : memref<32x1xf32, #tpu.memory_space<vmem>>, vector<32x1xf32>
    %cst_11 = arith.constant dense<0.000000e+00> : vector<16xf32>
    %14 = vector.multi_reduction <add>, %11, %cst_11 [1] : vector<16x16xf32> to vector<16xf32>
    %15 = vector.shape_cast %14 : vector<16xf32> to vector<16x1xf32>
    %16 = vector.extract_strided_slice %13 {offsets = [0, 0], sizes = [16, 1], strides = [1, 1]} : vector<32x1xf32> to vector<16x1xf32>
    %17 = arith.addf %15, %16 : vector<16x1xf32>
    %cst_12 = arith.constant dense<0.000000e+00> : vector<16xf32>
    %18 = vector.multi_reduction <add>, %12, %cst_12 [1] : vector<16x16xf32> to vector<16xf32>
    %19 = vector.shape_cast %18 : vector<16xf32> to vector<16x1xf32>
    %20 = vector.extract_strided_slice %13 {offsets = [16, 0], sizes = [16, 1], strides = [1, 1]} : vector<32x1xf32> to vector<16x1xf32>
    %21 = arith.addf %19, %20 : vector<16x1xf32>
    %22 = vector.broadcast %21 : vector<16x1xf32> to vector<16x16xf32>
    %23 = arith.addf %10, %22 : vector<16x16xf32>
    %24 = tpu.concatenate %8, %9, %23 in 1 : vector<16x16xf32>, vector<16x16xf32>, vector<16x16xf32> -> vector<16x48xf32>
    %c0_13 = arith.constant 0 : index
    %c0_14 = arith.constant 0 : index
    %25 = vector.load %arg2[%c0_13, %c0_14] : memref<16x8xf32, #tpu.memory_space<vmem>>, vector<16x8xf32>
    %cst_15 = arith.constant dense<0.000000e+00> : vector<16x256xf32>
    %26 = tpu.matmul %25, %0, %cst_15 {dimension_numbers = #tpu.dot_dimension_numbers<[1], [0], [0], [1], [0, 0, 1, 1], [], []>} : vector<16x8xf32>, vector<8x256xf32>, vector<16x256xf32> -> vector<16x256xf32>
    %c0_16 = arith.constant 0 : index
    %c0_17 = arith.constant 0 : index
    %27 = vector.load %arg6[%c0_16, %c0_17] : memref<48x256xf32, #tpu.memory_space<vmem>>, vector<48x256xf32>
    %cst_18 = arith.constant dense<0.000000e+00> : vector<16x256xf32>
    %28 = tpu.matmul %24, %27, %cst_18 {dimension_numbers = #tpu.dot_dimension_numbers<[1], [0], [0], [1], [0, 0, 1, 1], [], []>} : vector<16x48xf32>, vector<48x256xf32>, vector<16x256xf32> -> vector<16x256xf32>
    %29 = arith.addf %26, %28 : vector<16x256xf32>
    %30 = vector.broadcast %17 : vector<16x1xf32> to vector<16x256xf32>
    %31 = arith.addf %29, %30 : vector<16x256xf32>
    %c0_19 = arith.constant 0 : index
    %c0_20 = arith.constant 0 : index
    %32 = vector.load %arg8[%c0_19, %c0_20] : memref<16x256xf32, #tpu.memory_space<vmem>>, vector<16x256xf32>
    tpu.vector_store %arg8[%c0_19, %c0_20], %31 {strides = array<i32>} : memref<16x256xf32, #tpu.memory_space<vmem>>, vector<16x256xf32>,
    return
  }
  func.func @transform_0(%arg0: i32) -> (i32, i32) {
    %c0_i32 = arith.constant 0 : i32
    %c0_i32_0 = arith.constant 0 : i32
    return %arg0, %c0_i32 : i32, i32
  }
  func.func @transform_1(%arg0: i32) -> (i32, i32) {
    %c0_i32 = arith.constant 0 : i32
    %c0_i32_0 = arith.constant 0 : i32
    %c0_i32_1 = arith.constant 0 : i32
    return %c0_i32, %c0_i32_0 : i32, i32
  }
  func.func @transform_2(%arg0: i32) -> (i32, i32) {
    %c0_i32 = arith.constant 0 : i32
    %c0_i32_0 = arith.constant 0 : i32
    %c0_i32_1 = arith.constant 0 : i32
    return %c0_i32, %c0_i32_0 : i32, i32
  }
  func.func @transform_3(%arg0: i32) -> (i32, i32) {
    %c0_i32 = arith.constant 0 : i32
    %c0_i32_0 = arith.constant 0 : i32
    %c0_i32_1 = arith.constant 0 : i32
    return %c0_i32, %c0_i32_0 : i32, i32
  }
  func.func @transform_4(%arg0: i32) -> (i32, i32) {
    %c0_i32 = arith.constant 0 : i32
    %c0_i32_0 = arith.constant 0 : i32
    %c0_i32_1 = arith.constant 0 : i32
    return %c0_i32, %c0_i32_0 : i32, i32
  }
  func.func @transform_5(%arg0: i32) -> (i32, i32) {
    %c0_i32 = arith.constant 0 : i32
    %c0_i32_0 = arith.constant 0 : i32
    %c0_i32_1 = arith.constant 0 : i32
    return %c0_i32, %c0_i32_0 : i32, i32
  }
  func.func @transform_6(%arg0: i32) -> (i32, i32) {
    %c0_i32 = arith.constant 0 : i32
    %c0_i32_0 = arith.constant 0 : i32
    %c0_i32_1 = arith.constant 0 : i32
    return %c0_i32, %c0_i32_0 : i32, i32
  }
  func.func @transform_7(%arg0: i32) -> (i32, i32) {
    %c0_i32 = arith.constant 0 : i32
    %c0_i32_0 = arith.constant 0 : i32
    return %arg0, %c0_i32 : i32, i32
  }
}

</mosaic_0001>

<llo_original>
// kernel: tpu_custom_call.1
$region0: #{tpu_custom_call.1}
  #allocation0 [shape = 'u32[]', space=smem, size = 0x4, offset = 0x4, fixed_abs, tag = 'smem constant byte address 0x4 - core index']
  #allocation1 [shape = 'u32[144,128]{1,0:T(1,128)}', space=vmem, size = 0x12000, scoped, tag = 'internal scratch']
  %s0 = inlined_call_operand.vmem [shape: f32[8,256], index: 0, kind: input, shape index: {}]
  %s1 = inlined_call_operand.vmem [shape: f32[16,8], index: 1, kind: input, shape index: {}]
  %s2 = inlined_call_operand.vmem [shape: f32[80,16], index: 2, kind: input, shape index: {}]
  %s3 = inlined_call_operand.vmem [shape: f32[256,16], index: 3, kind: input, shape index: {}]
  %s4 = inlined_call_operand.vmem [shape: f32[256,16], index: 4, kind: input, shape index: {}]
  %s5 = inlined_call_operand.vmem [shape: f32[48,256], index: 5, kind: input, shape index: {}]
  %s6 = inlined_call_operand.vmem [shape: f32[32,1], index: 6, kind: input, shape index: {}]
  %s7 = inlined_call_operand.hbm [shape: f32[16,256], index: 7, kind: output, shape index: {}]
  %s8 = sld [smem:[#allocation0]]
  $region38: #{tpu_custom_call.1} parent=0
    _
  %s10 = ssub.s32 1, %s8
  %s11 = scalar_select 0, %s10, %s8
  $region1: #{tpu_custom_call.1} parent=0
    #allocation2 [shape = 'u8[16384]{0}', space=vmem, size = 0x4000, scoped, tag = 'output window, operand 0, single buffered']
    #allocation3 [shape = 's32[1]{0}', space=sflag, size = 0x4, scoped, tag = 'scoped memory for tpu_custom_call.1']
    %12 = vsyncpa [#allocation3], 0
    // Predicated region
    $region2: #{tpu_custom_call.1} parent=1 // pred_check
      _
    $region3: #{tpu_custom_call.1} parent=1 // pred_check_branch
      %14 = sbr.rel (0) target = $region5
    $region4: #{tpu_custom_call.1} parent=1 // pred_region
      _
    $region5: #{tpu_custom_call.1} parent=1 // pred_fallthru
      _
    // Predicated region
    $region6: #{tpu_custom_call.1} parent=1 // pred_check
      _
    $region7: #{tpu_custom_call.1} parent=1 // pred_check_branch
      %16 = sbr.rel (0) target = $region9
    $region8: #{tpu_custom_call.1} parent=1 // pred_region
      _
    $region9: #{tpu_custom_call.1} parent=1 // pred_fallthru
      _
    // Predicated region
    $region10: #{tpu_custom_call.1} parent=1 // pred_check
      _
    $region11: #{tpu_custom_call.1} parent=1 // pred_check_branch
      %18 = sbr.rel (0) target = $region13
    $region12: #{tpu_custom_call.1} parent=1 // pred_region
      _
    $region13: #{tpu_custom_call.1} parent=1 // pred_fallthru
      _
    // Predicated region
    $region14: #{tpu_custom_call.1} parent=1 // pred_check
      _
    $region15: #{tpu_custom_call.1} parent=1 // pred_check_branch
      %20 = sbr.rel (0) target = $region17
    $region16: #{tpu_custom_call.1} parent=1 // pred_region
      _
    $region17: #{tpu_custom_call.1} parent=1 // pred_fallthru
      _
    // Predicated region
    $region18: #{tpu_custom_call.1} parent=1 // pred_check
      _
    $region19: #{tpu_custom_call.1} parent=1 // pred_check_branch
      %22 = sbr.rel (0) target = $region21
    $region20: #{tpu_custom_call.1} parent=1 // pred_region
      _
    $region21: #{tpu_custom_call.1} parent=1 // pred_fallthru
      _
    // Predicated region
    $region22: #{tpu_custom_call.1} parent=1 // pred_check
      _
    $region23: #{tpu_custom_call.1} parent=1 // pred_check_branch
      %24 = sbr.rel (0) target = $region25
    $region24: #{tpu_custom_call.1} parent=1 // pred_region
      _
    $region25: #{tpu_custom_call.1} parent=1 // pred_fallthru
      _
    // Predicated region
    $region26: #{tpu_custom_call.1} parent=1 // pred_check
      _
    $region27: #{tpu_custom_call.1} parent=1 // pred_check_branch
      %26 = sbr.rel (0) target = $region29
    $region28: #{tpu_custom_call.1} parent=1 // pred_region
      _
    $region29: #{tpu_custom_call.1} parent=1 // pred_fallthru
      _
    %v27 = vld [vmem:[%s0] sm:$0xff]
    %v28 = vld [vmem:[%s0 + $0x8] sm:$0xff]
    %v29 = vld [vmem:[%s3] sm:$0xff]
    %v30 = vld [vmem:[%s3 + $0x8] sm:$0xff]
    %v31 = vld [vmem:[%s3 + $0x10] sm:$0xff]
    %v32 = vld [vmem:[%s3 + $0x18] sm:$0xff]
    %v33 = vld [vmem:[%s3 + $0x20] sm:$0xff]
    %v34 = vld [vmem:[%s3 + $0x28] sm:$0xff]
    %v35 = vld [vmem:[%s3 + $0x30] sm:$0xff]
    %v36 = vld [vmem:[%s3 + $0x38] sm:$0xff]
    %v37 = vld [vmem:[%s3 + $0x40] sm:$0xff]
    %v38 = vld [vmem:[%s3 + $0x48] sm:$0xff]
    %v39 = vld [vmem:[%s3 + $0x50] sm:$0xff]
    %v40 = vld [vmem:[%s3 + $0x58] sm:$0xff]
    %v41 = vld [vmem:[%s3 + $0x60] sm:$0xff]
    %v42 = vld [vmem:[%s3 + $0x68] sm:$0xff]
    %v43 = vld [vmem:[%s3 + $0x70] sm:$0xff]
    %v44 = vld [vmem:[%s3 + $0x78] sm:$0xff]
    %v45 = vld [vmem:[%s3 + $0x80] sm:$0xff]
    %v46 = vld [vmem:[%s3 + $0x88] sm:$0xff]
    %v47 = vld [vmem:[%s3 + $0x90] sm:$0xff]
    %v48 = vld [vmem:[%s3 + $0x98] sm:$0xff]
    %v49 = vld [vmem:[%s3 + $0xa0] sm:$0xff]
    %v50 = vld [vmem:[%s3 + $0xa8] sm:$0xff]
    %v51 = vld [vmem:[%s3 + $0xb0] sm:$0xff]
    %v52 = vld [vmem:[%s3 + $0xb8] sm:$0xff]
    %v53 = vld [vmem:[%s3 + $0xc0] sm:$0xff]
    %v54 = vld [vmem:[%s3 + $0xc8] sm:$0xff]
    %v55 = vld [vmem:[%s3 + $0xd0] sm:$0xff]
    %v56 = vld [vmem:[%s3 + $0xd8] sm:$0xff]
    %v57 = vld [vmem:[%s3 + $0xe0] sm:$0xff]
    %v58 = vld [vmem:[%s3 + $0xe8] sm:$0xff]
    %v59 = vld [vmem:[%s3 + $0xf0] sm:$0xff]
    %v60 = vld [vmem:[%s3 + $0xf8] sm:$0xff]
    %61 = vmatprep.subr.mxu0 0.0
    %62 = vmatpush1.msra.mxu0 %v44
    %63 = vmatprep.subr.mxu0 0.0
    %64 = vmatpush1.msra.mxu0 %v43
    %65 = vmatprep.subr.mxu0 0.0
    %66 = vmatpush1.msra.mxu0 %v42
    %67 = vmatprep.subr.mxu0 0.0
    %68 = vmatpush1.msra.mxu0 %v41
    %69 = vmatprep.subr.mxu0 0.0
    %70 = vmatpush1.msra.mxu0 %v40
    %71 = vmatprep.subr.mxu0 0.0
    %72 = vmatpush1.msra.mxu0 %v39
    %73 = vmatprep.subr.mxu0 0.0
    %74 = vmatpush1.msra.mxu0 %v38
    %75 = vmatprep.subr.mxu0 0.0
    %76 = vmatpush1.msra.mxu0 %v37
    %77 = vmatprep.subr.mxu0 0.0
    %78 = vmatpush1.msra.mxu0 %v36
    %79 = vmatprep.subr.mxu0 0.0
    %80 = vmatpush1.msra.mxu0 %v35
    %81 = vmatprep.subr.mxu0 0.0
    %82 = vmatpush1.msra.mxu0 %v34
    %83 = vmatprep.subr.mxu0 0.0
    %84 = vmatpush1.msra.mxu0 %v33
    %85 = vmatprep.subr.mxu0 0.0
    %86 = vmatpush1.msra.mxu0 %v32
    %87 = vmatprep.subr.mxu0 0.0
    %88 = vmatpush1.msra.mxu0 %v31
    %89 = vmatprep.subr.mxu0 0.0
    %90 = vmatpush1.msra.mxu0 %v30
    %91 = vmatprep.subr.mxu0 0.0
    %92 = vmatpush1.msra.mxu0 %v29
    %93 = vmatprep.subr.mxu0 0.0
    %94 = vmatpush2.msra.mxu0 %v60
    %95 = vmatprep.subr.mxu0 0.0
    %96 = vmatpush2.msra.mxu0 %v59
    %97 = vmatprep.subr.mxu0 0.0
    %98 = vmatpush2.msra.mxu0 %v58
    %99 = vmatprep.subr.mxu0 0.0
    %100 = vmatpush2.msra.mxu0 %v57
    %101 = vmatprep.subr.mxu0 0.0
    %102 = vmatpush2.msra.mxu0 %v56
    %103 = vmatprep.subr.mxu0 0.0
    %104 = vmatpush2.msra.mxu0 %v55
    %105 = vmatprep.subr.mxu0 0.0
    %106 = vmatpush2.msra.mxu0 %v54
    %107 = vmatprep.subr.mxu0 0.0
    %108 = vmatpush2.msra.mxu0 %v53
    %109 = vmatprep.subr.mxu0 0.0
    %110 = vmatpush2.msra.mxu0 %v52
    %111 = vmatprep.subr.mxu0 0.0
    %112 = vmatpush2.msra.mxu0 %v51
    %113 = vmatprep.subr.mxu0 0.0
    %114 = vmatpush2.msra.mxu0 %v50
    %115 = vmatprep.subr.mxu0 0.0
    %116 = vmatpush2.msra.mxu0 %v49
    %117 = vmatprep.subr.mxu0 0.0
    %118 = vmatpush2.msra.mxu0 %v48
    %119 = vmatprep.subr.mxu0 0.0
    %120 = vmatpush2.msra.mxu0 %v47
    %121 = vmatprep.subr.mxu0 0.0
    %122 = vmatpush2.msra.mxu0 %v46
    %123 = vmatprep.subr.mxu0 0.0
    %124 = vmatpush2.msra.mxu0 %v45
    %125 = vmatprep.mubr.f32.mxu0 %v28
    %126 = vmatmul.mubr.f32.gmra.mxu0 %v27
    %v127 = vpop.f32.mrf.mxu0
    %v128 = vadd.f32 0.0, %v127
    %v129 = vpop.f32.mrf.mxu0
    %130 = vdwg.mxu0
    %v131 = vld [vmem:[%s4] sm:$0xff]
    %v132 = vld [vmem:[%s4 + $0x8] sm:$0xff]
    %v133 = vld [vmem:[%s4 + $0x10] sm:$0xff]
    %v134 = vld [vmem:[%s4 + $0x18] sm:$0xff]
    %v135 = vld [vmem:[%s4 + $0x20] sm:$0xff]
    %v136 = vld [vmem:[%s4 + $0x28] sm:$0xff]
    %v137 = vld [vmem:[%s4 + $0x30] sm:$0xff]
    %v138 = vld [vmem:[%s4 + $0x38] sm:$0xff]
    %v139 = vld [vmem:[%s4 + $0x40] sm:$0xff]
    %v140 = vld [vmem:[%s4 + $0x48] sm:$0xff]
    %v141 = vld [vmem:[%s4 + $0x50] sm:$0xff]
    %v142 = vld [vmem:[%s4 + $0x58] sm:$0xff]
    %v143 = vld [vmem:[%s4 + $0x60] sm:$0xff]
    %v144 = vld [vmem:[%s4 + $0x68] sm:$0xff]
    %v145 = vld [vmem:[%s4 + $0x70] sm:$0xff]
    %v146 = vld [vmem:[%s4 + $0x78] sm:$0xff]
    %v147 = vld [vmem:[%s4 + $0x80] sm:$0xff]
    %v148 = vld [vmem:[%s4 + $0x88] sm:$0xff]
    %v149 = vld [vmem:[%s4 + $0x90] sm:$0xff]
    %v150 = vld [vmem:[%s4 + $0x98] sm:$0xff]
    %v151 = vld [vmem:[%s4 + $0xa0] sm:$0xff]
    %v152 = vld [vmem:[%s4 + $0xa8] sm:$0xff]
    %v153 = vld [vmem:[%s4 + $0xb0] sm:$0xff]
    %v154 = vld [vmem:[%s4 + $0xb8] sm:$0xff]
    %v155 = vld [vmem:[%s4 + $0xc0] sm:$0xff]
    %v156 = vld [vmem:[%s4 + $0xc8] sm:$0xff]
    %v157 = vld [vmem:[%s4 + $0xd0] sm:$0xff]
    %v158 = vld [vmem:[%s4 + $0xd8] sm:$0xff]
    %v159 = vld [vmem:[%s4 + $0xe0] sm:$0xff]
    %v160 = vld [vmem:[%s4 + $0xe8] sm:$0xff]
    %v161 = vld [vmem:[%s4 + $0xf0] sm:$0xff]
    %v162 = vld [vmem:[%s4 + $0xf8] sm:$0xff]
    %163 = vmatprep.subr.mxu0 0.0
    %164 = vmatpush1.msra.mxu0 %v146
    %165 = vmatprep.subr.mxu0 0.0
    %166 = vmatpush1.msra.mxu0 %v145
    %167 = vmatprep.subr.mxu0 0.0
    %168 = vmatpush1.msra.mxu0 %v144
    %169 = vmatprep.subr.mxu0 0.0
    %170 = vmatpush1.msra.mxu0 %v143
    %171 = vmatprep.subr.mxu0 0.0
    %172 = vmatpush1.msra.mxu0 %v142
    %173 = vmatprep.subr.mxu0 0.0
    %174 = vmatpush1.msra.mxu0 %v141
    %175 = vmatprep.subr.mxu0 0.0
    %176 = vmatpush1.msra.mxu0 %v140
    %177 = vmatprep.subr.mxu0 0.0
    %178 = vmatpush1.msra.mxu0 %v139
    %179 = vmatprep.subr.mxu0 0.0
    %180 = vmatpush1.msra.mxu0 %v138
    %181 = vmatprep.subr.mxu0 0.0
    %182 = vmatpush1.msra.mxu0 %v137
    %183 = vmatprep.subr.mxu0 0.0
    %184 = vmatpush1.msra.mxu0 %v136
    %185 = vmatprep.subr.mxu0 0.0
    %186 = vmatpush1.msra.mxu0 %v135
    %187 = vmatprep.subr.mxu0 0.0
    %188 = vmatpush1.msra.mxu0 %v134
    %189 = vmatprep.subr.mxu0 0.0
    %190 = vmatpush1.msra.mxu0 %v133
    %191 = vmatprep.subr.mxu0 0.0
    %192 = vmatpush1.msra.mxu0 %v132
    %193 = vmatprep.subr.mxu0 0.0
    %194 = vmatpush1.msra.mxu0 %v131
    %195 = vmatprep.subr.mxu0 0.0
    %196 = vmatpush2.msra.mxu0 %v162
    %197 = vmatprep.subr.mxu0 0.0
    %198 = vmatpush2.msra.mxu0 %v161
    %199 = vmatprep.subr.mxu0 0.0
    %200 = vmatpush2.msra.mxu0 %v160
    %201 = vmatprep.subr.mxu0 0.0
    %202 = vmatpush2.msra.mxu0 %v159
    %203 = vmatprep.subr.mxu0 0.0
    %204 = vmatpush2.msra.mxu0 %v158
    %205 = vmatprep.subr.mxu0 0.0
    %206 = vmatpush2.msra.mxu0 %v157
    %207 = vmatprep.subr.mxu0 0.0
    %208 = vmatpush2.msra.mxu0 %v156
    %209 = vmatprep.subr.mxu0 0.0
    %210 = vmatpush2.msra.mxu0 %v155
    %211 = vmatprep.subr.mxu0 0.0
    %212 = vmatpush2.msra.mxu0 %v154
    %213 = vmatprep.subr.mxu0 0.0
    %214 = vmatpush2.msra.mxu0 %v153
    %215 = vmatprep.subr.mxu0 0.0
    %216 = vmatpush2.msra.mxu0 %v152
    %217 = vmatprep.subr.mxu0 0.0
    %218 = vmatpush2.msra.mxu0 %v151
    %219 = vmatprep.subr.mxu0 0.0
    %220 = vmatpush2.msra.mxu0 %v150
    %221 = vmatprep.subr.mxu0 0.0
    %222 = vmatpush2.msra.mxu0 %v149
    %223 = vmatprep.subr.mxu0 0.0
    %224 = vmatpush2.msra.mxu0 %v148
    %225 = vmatprep.subr.mxu0 0.0
    %226 = vmatpush2.msra.mxu0 %v147
    %227 = vmatprep.mubr.f32.mxu0 %v28
    %228 = vmatmul.mubr.f32.gmra.mxu0 %v27
    %v229 = vpop.f32.mrf.mxu0
    %v230 = vadd.f32 0.0, %v229
    %v231 = vpop.f32.mrf.mxu0
    %232 = vdwg.mxu0
    %v233 = vld [vmem:[%s2] sm:$0xff]
    %v234 = vld [vmem:[%s2 + $0x8] sm:$0xff]
    %v235 = vld [vmem:[%s2 + $0x10] sm:$0xff]
    %v236 = vld [vmem:[%s2 + $0x18] sm:$0xff]
    %v237 = vld [vmem:[%s2 + $0x20] sm:$0xff]
    %v238 = vld [vmem:[%s2 + $0x28] sm:$0xff]
    %v239 = vld [vmem:[%s2 + $0x30] sm:$0xff]
    %v240 = vld [vmem:[%s2 + $0x38] sm:$0xff]
    %v241 = vld [vmem:[%s2 + $0x40] sm:$0xff]
    %v242 = vld [vmem:[%s2 + $0x48] sm:$0xff]
    %vm243 = vcmask 130048
    %v245 = vsel %vm243, %v233, 0
    %v248 = vsel %vm243, %v234, 0
    %v251 = vsel %vm243, %v235, 0
    %v254 = vsel %vm243, %v236, 0
    %v257 = vsel %vm243, %v237, 0
    %v260 = vsel %vm243, %v238, 0
    %v263 = vsel %vm243, %v239, 0
    %v266 = vsel %vm243, %v240, 0
    %v269 = vsel %vm243, %v241, 0
    %v272 = vsel %vm243, %v242, 0
    %274 = vmatprep.subr.mxu0 0.0
    %275 = vmatpush1.msra.mxu0 0.0
    %276 = vmatprep.subr.mxu0 0.0
    %277 = vmatpush1.msra.mxu0 0.0
    %278 = vmatprep.subr.mxu0 0.0
    %279 = vmatpush1.msra.mxu0 0.0
    %280 = vmatprep.subr.mxu0 0.0
    %281 = vmatpush1.msra.mxu0 0.0
    %282 = vmatprep.subr.mxu0 0.0
    %283 = vmatpush1.msra.mxu0 0.0
    %284 = vmatprep.subr.mxu0 0.0
    %285 = vmatpush1.msra.mxu0 0.0
    %286 = vmatprep.subr.mxu0 0.0
    %287 = vmatpush1.msra.mxu0 0.0
    %288 = vmatprep.subr.mxu0 0.0
    %289 = vmatpush1.msra.mxu0 0.0
    %290 = vmatprep.subr.mxu0 0.0
    %291 = vmatpush1.msra.mxu0 0.0
    %292 = vmatprep.subr.mxu0 0.0
    %293 = vmatpush1.msra.mxu0 0.0
    %294 = vmatprep.subr.mxu0 0.0
    %295 = vmatpush1.msra.mxu0 0.0
    %296 = vmatprep.subr.mxu0 0.0
    %297 = vmatpush1.msra.mxu0 0.0
    %298 = vmatprep.subr.mxu0 0.0
    %299 = vmatpush1.msra.mxu0 0.0
    %300 = vmatprep.subr.mxu0 0.0
    %301 = vmatpush1.msra.mxu0 0.0
    %302 = vmatprep.subr.mxu0 0.0
    %303 = vmatpush1.msra.mxu0 %v230
    %304 = vmatprep.subr.mxu0 0.0
    %305 = vmatpush1.msra.mxu0 %v128
    %306 = vmatprep.subr.mxu0 0.0
    %307 = vmatpush2.msra.mxu0 0.0
    %308 = vmatprep.subr.mxu0 0.0
    %309 = vmatpush2.msra.mxu0 0.0
    %310 = vmatprep.subr.mxu0 0.0
    %311 = vmatpush2.msra.mxu0 0.0
    %312 = vmatprep.subr.mxu0 0.0
    %313 = vmatpush2.msra.mxu0 0.0
    %314 = vmatprep.subr.mxu0 0.0
    %315 = vmatpush2.msra.mxu0 0.0
    %316 = vmatprep.subr.mxu0 0.0
    %317 = vmatpush2.msra.mxu0 0.0
    %318 = vmatprep.subr.mxu0 0.0
    %319 = vmatpush2.msra.mxu0 0.0
    %320 = vmatprep.subr.mxu0 0.0
    %321 = vmatpush2.msra.mxu0 0.0
    %322 = vmatprep.subr.mxu0 0.0
    %323 = vmatpush2.msra.mxu0 0.0
    %324 = vmatprep.subr.mxu0 0.0
    %325 = vmatpush2.msra.mxu0 0.0
    %326 = vmatprep.subr.mxu0 0.0
    %327 = vmatpush2.msra.mxu0 0.0
    %328 = vmatprep.subr.mxu0 0.0
    %329 = vmatpush2.msra.mxu0 0.0
    %330 = vmatprep.subr.mxu0 0.0
    %331 = vmatpush2.msra.mxu0 0.0
    %332 = vmatprep.subr.mxu0 0.0
    %333 = vmatpush2.msra.mxu0 0.0
    %334 = vmatprep.subr.mxu0 0.0
    %335 = vmatpush2.msra.mxu0 0.0
    %336 = vmatprep.subr.mxu0 0.0
    %337 = vmatpush2.msra.mxu0 0.0
    %338 = vmatprep.mubr.f32.mxu0 0.0
    %339 = vmatmul.mubr.f32.gmra.mxu0 %v245
    %v340 = vpop.f32.mrf.mxu0
    %v341 = vadd.f32 0.0, %v340
    %v342 = vpop.f32.mrf.mxu0
    %343 = vmatprep.mubr.f32.mxu0 0.0
    %344 = vmatmul.mubr.f32.gmra.mxu0 %v248
    %v345 = vpop.f32.mrf.mxu0
    %v346 = vadd.f32 0.0, %v345
    %v347 = vpop.f32.mrf.mxu0
    %348 = vmatprep.mubr.f32.mxu0 0.0
    %349 = vmatmul.mubr.f32.gmra.mxu0 %v251
    %v350 = vpop.f32.mrf.mxu0
    %v351 = vadd.f32 0.0, %v350
    %v352 = vpop.f32.mrf.mxu0
    %353 = vmatprep.mubr.f32.mxu0 0.0
    %354 = vmatmul.mubr.f32.gmra.mxu0 %v254
    %v355 = vpop.f32.mrf.mxu0
    %v356 = vadd.f32 0.0, %v355
    %v357 = vpop.f32.mrf.mxu0
    %358 = vmatprep.mubr.f32.mxu0 0.0
    %359 = vmatmul.mubr.f32.gmra.mxu0 %v257
    %v360 = vpop.f32.mrf.mxu0
    %v361 = vadd.f32 0.0, %v360
    %v362 = vpop.f32.mrf.mxu0
    %363 = vmatprep.mubr.f32.mxu0 0.0
    %364 = vmatmul.mubr.f32.gmra.mxu0 %v260
    %v365 = vpop.f32.mrf.mxu0
    %v366 = vadd.f32 0.0, %v365
    %v367 = vpop.f32.mrf.mxu0
    %368 = vmatprep.mubr.f32.mxu0 0.0
    %369 = vmatmul.mubr.f32.gmra.mxu0 %v263
    %v370 = vpop.f32.mrf.mxu0
    %v371 = vadd.f32 0.0, %v370
    %v372 = vpop.f32.mrf.mxu0
    %373 = vmatprep.mubr.f32.mxu0 0.0
    %374 = vmatmul.mubr.f32.gmra.mxu0 %v266
    %v375 = vpop.f32.mrf.mxu0
    %v376 = vadd.f32 0.0, %v375
    %v377 = vpop.f32.mrf.mxu0
    %378 = vmatprep.mubr.f32.mxu0 0.0
    %379 = vmatmul.mubr.f32.gmra.mxu0 %v269
    %v380 = vpop.f32.mrf.mxu0
    %v381 = vadd.f32 0.0, %v380
    %v382 = vpop.f32.mrf.mxu0
    %383 = vmatprep.mubr.f32.mxu0 0.0
    %384 = vmatmul.mubr.f32.gmra.mxu0 %v272
    %v385 = vpop.f32.mrf.mxu0
    %v386 = vadd.f32 0.0, %v385
    %v387 = vpop.f32.mrf.mxu0
    %388 = vdwg.mxu0
    %v389 = vld [vmem:[%s6] sm:$0xff]
    %v390 = vld [vmem:[%s6 + $0x8] sm:$0xff]
    %v391 = vld [vmem:[%s6 + $0x10] sm:$0xff]
    %v392 = vld [vmem:[%s6 + $0x18] sm:$0xff]
    %v393 = vsel %vm243, %v371, 0.0
    %394 = vadd.xlane.f32.xlu0 %v393
    %v395 = vpop.xlane.xlu0 %394
    %v396 = vsel %vm243, %v376, 0.0
    %397 = vadd.xlane.f32.xlu0 %v396
    %v398 = vpop.xlane.xlu0 %397
    %v399 = vadd.f32 %v395, %v389
    %v400 = vadd.f32 %v398, %v390
    %v401 = vsel %vm243, %v381, 0.0
    %402 = vadd.xlane.f32.xlu0 %v401
    %v403 = vpop.xlane.xlu0 %402
    %v404 = vsel %vm243, %v386, 0.0
    %405 = vadd.xlane.f32.xlu0 %v404
    %v406 = vpop.xlane.xlu0 %405
    %v407 = vadd.f32 %v403, %v391
    %v408 = vadd.f32 %v406, %v392
    %410 = vset.pattern.permute.xlu0 0
    %411 = vperm.xlu0 %410, %v407
    %v412 = vpop.permute.xlu0 %411
    %415 = vset.pattern.permute.xlu0 0
    %416 = vperm.xlu0 %415, %v408
    %v417 = vpop.permute.xlu0 %416
    %v419 = vadd.f32 %v361, %v412
    %v420 = vadd.f32 %v366, %v417
    %423 = vrot.lane.b32.xlu0 %v351, 16
    %v424 = vpop.permute.xlu0 %423
    %425 = vrot.lane.b32.xlu0 %v356, 16
    %v426 = vpop.permute.xlu0 %425
    %431 = vrot.lane.b32.xlu0 %v419, 32
    %v432 = vpop.permute.xlu0 %431
    %433 = vrot.lane.b32.xlu0 %v420, 32
    %v434 = vpop.permute.xlu0 %433
    %v437 = vsel %vm243, %v341, %v424
    %v438 = vsel %vm243, %v346, %v426
    %vm439 = vcmask 261120
    %v440 = vsel %vm439, %v437, %v432
    %v441 = vsel %vm439, %v438, %v434
    %v442 = vld [vmem:[%s1] sm:$0xff]
    %v443 = vld [vmem:[%s1 + $0x8] sm:$0xff]
    %v444 = vld [vmem:[%s5] sm:$0xff]
    %v445 = vld [vmem:[%s5 + $0x8] sm:$0xff]
    %v446 = vld [vmem:[%s5 + $0x10] sm:$0xff]
    %v447 = vld [vmem:[%s5 + $0x18] sm:$0xff]
    %v448 = vld [vmem:[%s5 + $0x20] sm:$0xff]
    %v449 = vld [vmem:[%s5 + $0x28] sm:$0xff]
    %v450 = vld [vmem:[%s5 + $0x30] sm:$0xff]
    %v451 = vld [vmem:[%s5 + $0x38] sm:$0xff]
    %v452 = vld [vmem:[%s5 + $0x40] sm:$0xff]
    %v453 = vld [vmem:[%s5 + $0x48] sm:$0xff]
    %v454 = vld [vmem:[%s5 + $0x50] sm:$0xff]
    %v455 = vld [vmem:[%s5 + $0x58] sm:$0xff]
    %vm456 = vcmask 392192
    %v458 = vsel %vm456, %v440, 0
    %v461 = vsel %vm456, %v441, 0
    %463 = vmatprep.subr.mxu0 0.0
    %464 = vmatpush1.msra.mxu0 0.0
    %465 = vmatprep.subr.mxu0 0.0
    %466 = vmatpush1.msra.mxu0 0.0
    %467 = vmatprep.subr.mxu0 0.0
    %468 = vmatpush1.msra.mxu0 0.0
    %469 = vmatprep.subr.mxu0 0.0
    %470 = vmatpush1.msra.mxu0 0.0
    %471 = vmatprep.subr.mxu0 0.0
    %472 = vmatpush1.msra.mxu0 0.0
    %473 = vmatprep.subr.mxu0 0.0
    %474 = vmatpush1.msra.mxu0 0.0
    %475 = vmatprep.subr.mxu0 0.0
    %476 = vmatpush1.msra.mxu0 0.0
    %477 = vmatprep.subr.mxu0 0.0
    %478 = vmatpush1.msra.mxu0 0.0
    %479 = vmatprep.subr.mxu0 0.0
    %480 = vmatpush1.msra.mxu0 0.0
    %481 = vmatprep.subr.mxu0 0.0
    %482 = vmatpush1.msra.mxu0 0.0
    %483 = vmatprep.subr.mxu0 %v455
    %484 = vmatpush1.msra.mxu0 %v454
    %485 = vmatprep.subr.mxu0 %v453
    %486 = vmatpush1.msra.mxu0 %v452
    %487 = vmatprep.subr.mxu0 %v451
    %488 = vmatpush1.msra.mxu0 %v450
    %489 = vmatprep.subr.mxu0 %v449
    %490 = vmatpush1.msra.mxu0 %v448
    %491 = vmatprep.subr.mxu0 %v447
    %492 = vmatpush1.msra.mxu0 %v446
    %493 = vmatprep.subr.mxu0 %v445
    %494 = vmatpush1.msra.mxu0 %v444
    %495 = vmatprep.subr.mxu0 0.0
    %496 = vmatpush2.msra.mxu0 0.0
    %497 = vmatprep.subr.mxu0 0.0
    %498 = vmatpush2.msra.mxu0 0.0
    %499 = vmatprep.subr.mxu0 0.0
    %500 = vmatpush2.msra.mxu0 0.0
    %501 = vmatprep.subr.mxu0 0.0
    %502 = vmatpush2.msra.mxu0 0.0
    %503 = vmatprep.subr.mxu0 0.0
    %504 = vmatpush2.msra.mxu0 0.0
    %505 = vmatprep.subr.mxu0 0.0
    %506 = vmatpush2.msra.mxu0 0.0
    %507 = vmatprep.subr.mxu0 0.0
    %508 = vmatpush2.msra.mxu0 0.0
    %509 = vmatprep.subr.mxu0 0.0
    %510 = vmatpush2.msra.mxu0 0.0
    %511 = vmatprep.subr.mxu0 0.0
    %512 = vmatpush2.msra.mxu0 0.0
    %513 = vmatprep.subr.mxu0 0.0
    %514 = vmatpush2.msra.mxu0 0.0
    %515 = vmatprep.subr.mxu0 0.0
    %516 = vmatpush2.msra.mxu0 0.0
    %517 = vmatprep.subr.mxu0 0.0
    %518 = vmatpush2.msra.mxu0 0.0
    %519 = vmatprep.subr.mxu0 0.0
    %520 = vmatpush2.msra.mxu0 0.0
    %521 = vmatprep.subr.mxu0 0.0
    %522 = vmatpush2.msra.mxu0 0.0
    %523 = vmatprep.subr.mxu0 0.0
    %524 = vmatpush2.msra.mxu0 0.0
    %525 = vmatprep.subr.mxu0 0.0
    %526 = vmatpush2.msra.mxu0 0.0
    %527 = vmatprep.mubr.f32.mxu0 0.0
    %528 = vmatmul.mubr.f32.gmra.mxu0 %v458
    %v529 = vpop.f32.mrf.mxu0
    %v530 = vadd.f32 0.0, %v529
    %v531 = vpop.f32.mrf.mxu0
    %v532 = vadd.f32 0.0, %v531
    %533 = vmatprep.mubr.f32.mxu0 0.0
    %534 = vmatmul.mubr.f32.gmra.mxu0 %v461
    %v535 = vpop.f32.mrf.mxu0
    %v536 = vadd.f32 0.0, %v535
    %v537 = vpop.f32.mrf.mxu0
    %v538 = vadd.f32 0.0, %v537
    %539 = vdwg.mxu0
    %vm540 = vcmask 64512
    %v542 = vsel %vm540, %v442, 0
    %v545 = vsel %vm540, %v443, 0
    %547 = vmatprep.subr.mxu0 0.0
    %548 = vmatpush1.msra.mxu0 0.0
    %549 = vmatprep.subr.mxu0 0.0
    %550 = vmatpush1.msra.mxu0 0.0
    %551 = vmatprep.subr.mxu0 0.0
    %552 = vmatpush1.msra.mxu0 0.0
    %553 = vmatprep.subr.mxu0 0.0
    %554 = vmatpush1.msra.mxu0 0.0
    %555 = vmatprep.subr.mxu0 0.0
    %556 = vmatpush1.msra.mxu0 0.0
    %557 = vmatprep.subr.mxu0 0.0
    %558 = vmatpush1.msra.mxu0 0.0
    %559 = vmatprep.subr.mxu0 0.0
    %560 = vmatpush1.msra.mxu0 0.0
    %561 = vmatprep.subr.mxu0 0.0
    %562 = vmatpush1.msra.mxu0 0.0
    %563 = vmatprep.subr.mxu0 0.0
    %564 = vmatpush1.msra.mxu0 0.0
    %565 = vmatprep.subr.mxu0 0.0
    %566 = vmatpush1.msra.mxu0 0.0
    %567 = vmatprep.subr.mxu0 0.0
    %568 = vmatpush1.msra.mxu0 0.0
    %569 = vmatprep.subr.mxu0 0.0
    %570 = vmatpush1.msra.mxu0 0.0
    %571 = vmatprep.subr.mxu0 0.0
    %572 = vmatpush1.msra.mxu0 0.0
    %573 = vmatprep.subr.mxu0 0.0
    %574 = vmatpush1.msra.mxu0 0.0
    %575 = vmatprep.subr.mxu0 0.0
    %576 = vmatpush1.msra.mxu0 0.0
    %577 = vmatprep.subr.mxu0 %v28
    %578 = vmatpush1.msra.mxu0 %v27
    %579 = vmatprep.subr.mxu0 0.0
    %580 = vmatpush2.msra.mxu0 0.0
    %581 = vmatprep.subr.mxu0 0.0
    %582 = vmatpush2.msra.mxu0 0.0
    %583 = vmatprep.subr.mxu0 0.0
    %584 = vmatpush2.msra.mxu0 0.0
    %585 = vmatprep.subr.mxu0 0.0
    %586 = vmatpush2.msra.mxu0 0.0
    %587 = vmatprep.subr.mxu0 0.0
    %588 = vmatpush2.msra.mxu0 0.0
    %589 = vmatprep.subr.mxu0 0.0
    %590 = vmatpush2.msra.mxu0 0.0
    %591 = vmatprep.subr.mxu0 0.0
    %592 = vmatpush2.msra.mxu0 0.0
    %593 = vmatprep.subr.mxu0 0.0
    %594 = vmatpush2.msra.mxu0 0.0
    %595 = vmatprep.subr.mxu0 0.0
    %596 = vmatpush2.msra.mxu0 0.0
    %597 = vmatprep.subr.mxu0 0.0
    %598 = vmatpush2.msra.mxu0 0.0
    %599 = vmatprep.subr.mxu0 0.0
    %600 = vmatpush2.msra.mxu0 0.0
    %601 = vmatprep.subr.mxu0 0.0
    %602 = vmatpush2.msra.mxu0 0.0
    %603 = vmatprep.subr.mxu0 0.0
    %604 = vmatpush2.msra.mxu0 0.0
    %605 = vmatprep.subr.mxu0 0.0
    %606 = vmatpush2.msra.mxu0 0.0
    %607 = vmatprep.subr.mxu0 0.0
    %608 = vmatpush2.msra.mxu0 0.0
    %609 = vmatprep.subr.mxu0 0.0
    %610 = vmatpush2.msra.mxu0 0.0
    %611 = vmatprep.mubr.f32.mxu0 0.0
    %612 = vmatmul.mubr.f32.gmra.mxu0 %v542
    %v613 = vpop.f32.mrf.mxu0
    %v614 = vadd.f32 %v530, %v613
    %v615 = vpop.f32.mrf.mxu0
    %v616 = vadd.f32 %v532, %v615
    %617 = vmatprep.mubr.f32.mxu0 0.0
    %618 = vmatmul.mubr.f32.gmra.mxu0 %v545
    %v619 = vpop.f32.mrf.mxu0
    %v620 = vadd.f32 %v536, %v619
    %v621 = vpop.f32.mrf.mxu0
    %v622 = vadd.f32 %v538, %v621
    %623 = vdwg.mxu0
    %625 = vset.pattern.permute.xlu0 0
    %626 = vperm.xlu0 %625, %v399
    %v627 = vpop.permute.xlu0 %626
    %630 = vset.pattern.permute.xlu0 0
    %631 = vperm.xlu0 %630, %v400
    %v632 = vpop.permute.xlu0 %631
    %v634 = vadd.f32 %v614, %v627
    %v635 = vadd.f32 %v616, %v627
    %v636 = vadd.f32 %v620, %v632
    %v637 = vadd.f32 %v622, %v632
    %638 = vst [vmem:[#allocation2] sm:$0xff] %v634
    %639 = vst [vmem:[#allocation2 + $0x8] sm:$0xff] %v635
    %640 = vst [vmem:[#allocation2 + $0x10] sm:$0xff] %v636
    %641 = vst [vmem:[#allocation2 + $0x18] sm:$0xff] %v637
    // Predicated region
    $region30: #{tpu_custom_call.1} parent=1 // pred_check
      _
    $region31: #{tpu_custom_call.1} parent=1 // pred_check_branch
      %643 = sbr.rel (0) target = $region33
    $region32: #{tpu_custom_call.1} parent=1 // pred_region
      %s645 = ssub.s32 512, 512
      %646 = vsyncadd [#allocation3], %s645
      %s647 = sshll.u32 [#allocation2], 4
      %s648 = int_to_ptr.vmem [resolvable:$true] %s647
      %653 = dma.vmem_to_hbm [thread:$0]  %s648, 512, %s7, [#allocation3], 256, 256, 16
    $region33: #{tpu_custom_call.1} parent=1 // pred_fallthru
      _
    // Predicated region
    $region34: #{tpu_custom_call.1} parent=1 // pred_check
      _
    $region35: #{tpu_custom_call.1} parent=1 // pred_check_branch
      %655 = sbr.rel (0) target = $region37
    $region36: #{tpu_custom_call.1} parent=1 // pred_region
      %656 = dma.done [#allocation3], 512
    $region37: #{tpu_custom_call.1} parent=1 // pred_fallthru
      _
    %657 = vsyncpa [#allocation3], 1

</llo_original>
